<compile_context>
chip_gen: v6e
topology: v6e:2x2x1
jax: 0.10.0
libtpu: 0.0.40
codegen_flags: <defaults>
</compile_context>

<pallas_src>
import jax
import jax.numpy as jnp
from jax.experimental import pallas as pl
from jax.experimental.pallas import tpu as pltpu


def _round_up(x, m):
    return (x + m - 1) // m * m


def _vmem_limit_bytes():
    """Generation-aware scoped-VMEM request with headroom (v5e/v6e: 100 MiB, v7x: ~56 MiB)."""
    try:
        cap = pltpu.get_tpu_info().vmem_capacity_bytes
    except Exception:
        cap = 64 * 1024 * 1024
    return int(min(100 * 1024 * 1024, cap * 7 // 8))


def _pick_batch_tile(B, batch_tile):
    # Multiple of 16 rows (bf16 packs 16 rows per sublane vreg).
    tb = min(batch_tile, _round_up(B, 16))
    # Prefer >= 2 grid tiles so the "parallel" batch axis can shard across both
    # TensorCores on v7x.
    if B > 16 and pl.cdiv(B, tb) < 2:
        tb = max(16, _round_up(pl.cdiv(B, 2), 16))
    return tb


def _pick_k_tile(Kin, max_tile=4096):
    """Largest multiple-of-128 divisor of Kin that is <= max_tile.

    Falls back to full Kin (single K step, w1 fully resident) when Kin is small or
    has no suitable divisor (partial K blocks on a reduction axis are not safe)."""
    if Kin <= max_tile:
        return Kin
    best = None
    t = 128
    while t <= max_tile:
        if Kin % t == 0:
            best = t
        t += 128
    return best if best is not None else Kin


def gfem_kernel(x_ref, w1_ref, b1_ref, w2_ref, b2_ref, o_ref, acc_ref):
    k = pl.program_id(1)

    @pl.when(k == 0)
    def _():
        acc_ref[...] = jnp.zeros_like(acc_ref)

    # 1st "conv" (full-length Conv1d == matmul); BN scale already folded into w1.
    # bf16 MXU operands (cast in-kernel, x stays f32 in HBM), f32 accumulation.
    x = x_ref[...].astype(jnp.bfloat16)
    acc_ref[...] += jnp.dot(x, w1_ref[...], preferred_element_type=jnp.float32)

    @pl.when(k == pl.num_programs(1) - 1)
    def _():
        h = jnp.maximum(acc_ref[...] + b1_ref[...], 0.0)
        # 2nd 1x1 conv (matmul); BN scale folded into w2.
        o = jnp.dot(h.astype(jnp.bfloat16), w2_ref[...],
                    preferred_element_type=jnp.float32)
        o_ref[...] = jnp.maximum(o + b2_ref[...], 0.0).astype(o_ref.dtype)


def gfem_fold_params(params, *, eps=1e-5):
    """One-time host glue (cache the result per parameter set).

    Folds conv bias + eval-mode BN into the weights/biases, moves the (0,2,1)
    activation permutation onto the static Conv1d weight and zero-pads the lane
    dims to multiples of 128."""
    w1 = params["w1"]                      # [4C, C, N]
    H, C, N = w1.shape
    Kin = N * C
    Hp = _round_up(H, 128)
    Cp = _round_up(C, 128)

    s1 = params["g1"] / jnp.sqrt(params["rv1"] + eps)              # [4C]
    fb1 = (params["b1"] - params["rm1"]) * s1 + params["beta1"]    # [4C]
    s2 = params["g2"] / jnp.sqrt(params["rv2"] + eps)              # [C]
    fb2 = (params["b2"] - params["rm2"]) * s2 + params["beta2"]    # [C]

    # out[b, o] = sum_{n, c} x[b, n, c] * w1[o, c, n]
    w1_mat = jnp.transpose(w1, (2, 1, 0)).reshape(Kin, H) * s1[None, :]   # [N*C, 4C]
    w2_mat = jnp.transpose(params["w2"].reshape(C, H)) * s2[None, :]      # [4C, C]

    w1_p = jnp.zeros((Kin, Hp), jnp.bfloat16).at[:, :H].set(w1_mat.astype(jnp.bfloat16))
    w2_p = jnp.zeros((Hp, Cp), jnp.bfloat16).at[:H, :C].set(w2_mat.astype(jnp.bfloat16))
    b1_p = jnp.zeros((1, Hp), jnp.float32).at[0, :H].set(fb1)
    b2_p = jnp.zeros((1, Cp), jnp.float32).at[0, :C].set(fb2)

    return {"w1": w1_p, "b1": b1_p, "w2": w2_p, "b2": b2_p,
            "dims": (N, C, H, Kin, Hp, Cp)}


def gfem_forward(x, folded, *, batch_tile=256):
    """x: [B, N, C] float32 -> [B, 1, C] float32 (eval-mode BN).

    `folded` is the output of gfem_fold_params (cache it across calls)."""
    N, C, H, Kin, Hp, Cp = folded["dims"]
    B = x.shape[0]
    assert x.shape == (B, N, C), (x.shape, (B, N, C))

    TB = _pick_batch_tile(B, batch_tile)   # NOTE: batch_tile=128 may suit v5e better.
    TK = _pick_k_tile(Kin)
    num_b = pl.cdiv(B, TB)
    num_k = Kin // TK

    # Free (metadata) reshape; no padded copy, no host-side bf16 cast.
    x_flat = x.reshape(B, Kin)

    flops = 2 * num_b * TB * (Kin * Hp + Hp * Cp)
    bytes_accessed = (B * Kin * 4                    # x (f32, read once)
                      + num_b * Kin * Hp * 2         # w1 tiles
                      + Hp * Cp * 2 + (Hp + Cp) * 4  # w2 + biases
                      + B * Cp * 2)                  # bf16 output writeback

    def _spec(shape, index_map, mode):
        if mode is None:
            return pl.BlockSpec(shape, index_map)
        return pl.BlockSpec(shape, index_map, pipeline_mode=mode)

    def _call(single_buffer_invariants):
        inv_mode = pl.Buffered(1) if single_buffer_invariants else None
        w1_mode = inv_mode if num_k == 1 else None    # K-tiled w1 needs double-buffering
        in_specs = [
            _spec((TB, TK), lambda i, k: (i, k), None),       # x tile (streamed)
            _spec((TK, Hp), lambda i, k: (k, 0), w1_mode),    # w1
            _spec((1, Hp), lambda i, k: (0, 0), inv_mode),    # folded bias 1
            _spec((Hp, Cp), lambda i, k: (0, 0), inv_mode),   # w2
            _spec((1, Cp), lambda i, k: (0, 0), inv_mode),    # folded bias 2
        ]
        return pl.pallas_call(
            gfem_kernel,
            out_shape=jax.ShapeDtypeStruct((B, Cp), jnp.bfloat16),
            grid=(num_b, num_k),
            in_specs=in_specs,
            out_specs=pl.BlockSpec((TB, Cp), lambda i, k: (i, 0)),
            scratch_shapes=[pltpu.VMEM((TB, Hp), jnp.float32)],
            compiler_params=pltpu.CompilerParams(
                dimension_semantics=("parallel", "arbitrary"),
                vmem_limit_bytes=_vmem_limit_bytes()),
            cost_estimate=pl.CostEstimate(
                flops=flops, transcendentals=0, bytes_accessed=bytes_accessed),
        )(x_flat, folded["w1"], folded["b1"], folded["w2"], folded["b2"])

    try:
        out = _call(True)
    except Exception:
        # pl.Buffered(1) single-buffering not supported by this JAX build ->
        # fall back to default (double-buffered) BlockSpecs.
        out = _call(False)

    return out[:, :C].astype(jnp.float32).reshape(B, 1, C)


def gfem_reference(x, params, *, eps=1e-5):
    """Pure-JAX f32 reference of the same (eval-mode BN) forward."""
    B, N, C = x.shape
    H = 4 * C
    xp = jnp.transpose(x, (0, 2, 1)).reshape(B, C * N)
    h = xp @ params["w1"].reshape(H, C * N).T + params["b1"]
    h = (h - params["rm1"]) / jnp.sqrt(params["rv1"] + eps) * params["g1"] + params["beta1"]
    h = jnp.maximum(h, 0.0)
    o = h @ params["w2"].reshape(C, H).T + params["b2"]
    o = (o - params["rm2"]) / jnp.sqrt(params["rv2"] + eps) * params["g2"] + params["beta2"]
    o = jnp.maximum(o, 0.0)
    return o.reshape(B, 1, C)


def init_params(key, in_dim, num_nodes):
    C, N, H = in_dim, num_nodes, 4 * in_dim
    ks = jax.random.split(key, 8)
    scale1 = 1.0 / jnp.sqrt(jnp.float32(C * N))
    scale2 = 1.0 / jnp.sqrt(jnp.float32(H))
    return {
        "w1": jax.random.normal(ks[0], (H, C, N), jnp.float32) * scale1,
        "b1": jax.random.normal(ks[1], (H,), jnp.float32) * 0.1,
        "g1": 1.0 + 0.1 * jax.random.normal(ks[2], (H,), jnp.float32),
        "beta1": 0.1 * jax.random.normal(ks[3], (H,), jnp.float32),
        "rm1": jnp.zeros((H,), jnp.float32),
        "rv1": jnp.ones((H,), jnp.float32),
        "w2": jax.random.normal(ks[4], (C, H, 1), jnp.float32) * scale2,
        "b2": jax.random.normal(ks[5], (C,), jnp.float32) * 0.1,
        "g2": 1.0 + 0.1 * jax.random.normal(ks[6], (C,), jnp.float32),
        "beta2": 0.1 * jax.random.normal(ks[7], (C,), jnp.float32),
        "rm2": jnp.zeros((C,), jnp.float32),
        "rv2": jnp.ones((C,), jnp.float32),
    }


if __name__ == "__main__":
    B, N, C = 2, 8, 16   # batch, num_nodes, in_dim
    key = jax.random.PRNGKey(0)
    kx, kp = jax.random.split(key)
    x = jax.random.normal(kx, (B, N, C), jnp.float32)
    params = init_params(kp, C, N)

    folded = gfem_fold_params(params)   # one-time host glue; cache across calls
    out = gfem_forward(x, folded)
    out = jax.block_until_ready(out)

    ref = gfem_reference(x, params)
    assert out.shape == (B, 1, C)
    # bf16 matmul operands + bf16 output (f32 accumulation) -> loosened tolerance.
    assert jnp.allclose(out, ref, atol=5e-2, rtol=5e-2), "mismatch vs reference"
    print("KERNEL_OK")
</pallas_src>

<mosaic_0001>
module attributes {stable_mosaic.version = 11 : i64} {
  func.func @gfem_kernel(%arg0: i32, %arg1: i32, %arg2: memref<16x128xf32, #tpu.memory_space<vmem>>, %arg3: memref<128x128xbf16, #tpu.memory_space<vmem>>, %arg4: memref<1x128xf32, #tpu.memory_space<vmem>>, %arg5: memref<128x128xbf16, #tpu.memory_space<vmem>>, %arg6: memref<1x128xf32, #tpu.memory_space<vmem>>, %arg7: memref<16x128xbf16, #tpu.memory_space<vmem>>, %arg8: memref<16x128xf32, #tpu.memory_space<vmem>>) attributes {dimension_semantics = [#tpu.dimension_semantics<parallel>, #tpu.dimension_semantics<arbitrary>], iteration_bounds = array<i64: 1, 1>, scalar_prefetch = 0 : i64, scratch_operands = 1 : i64, tpu.core_type = #tpu.core_type<tc>, window_params = [{transform_indices = @transform_0, window_bounds = array<i64: 16, 128>}, {pipeline_mode = #tpu.pipeline_mode<synchronous>, transform_indices = @transform_1, window_bounds = array<i64: 128, 128>}, {pipeline_mode = #tpu.pipeline_mode<synchronous>, transform_indices = @transform_2, window_bounds = array<i64: 1, 128>}, {pipeline_mode = #tpu.pipeline_mode<synchronous>, transform_indices = @transform_3, window_bounds = array<i64: 128, 128>}, {pipeline_mode = #tpu.pipeline_mode<synchronous>, transform_indices = @transform_4, window_bounds = array<i64: 1, 128>}, {transform_indices = @transform_5, window_bounds = array<i64: 16, 128>}]} {
    %c0_i32 = arith.constant 0 : i32
    %0 = arith.cmpi eq, %arg1, %c0_i32 : i32
    %1 = arith.extui %0 : i1 to i32
    %c0_i32_0 = arith.constant 0 : i32
    %2 = arith.cmpi ne, %1, %c0_i32_0 : i32
    scf.if %2 {
      %cst_10 = arith.constant 0.000000e+00 : f32
      %13 = vector.broadcast %cst_10 : f32 to vector<16x128xf32>
      %c0_11 = arith.constant 0 : index
      %c0_12 = arith.constant 0 : index
      %14 = vector.load %arg8[%c0_11, %c0_12] : memref<16x128xf32, #tpu.memory_space<vmem>>, vector<16x128xf32>
      tpu.vector_store %arg8[%c0_11, %c0_12], %13 {strides = array<i32>} : memref<16x128xf32, #tpu.memory_space<vmem>>, vector<16x128xf32>,
    } else {
    }
    %c0 = arith.constant 0 : index
    %c0_1 = arith.constant 0 : index
    %3 = vector.load %arg2[%c0, %c0_1] : memref<16x128xf32, #tpu.memory_space<vmem>>, vector<16x128xf32>
    %4 = arith.truncf %3 : vector<16x128xf32> to vector<16x128xbf16>
    %c0_2 = arith.constant 0 : index
    %c0_3 = arith.constant 0 : index
    %5 = vector.load %arg8[%c0_2, %c0_3] : memref<16x128xf32, #tpu.memory_space<vmem>>, vector<16x128xf32>
    %c0_4 = arith.constant 0 : index
    %c0_5 = arith.constant 0 : index
    %6 = vector.load %arg3[%c0_4, %c0_5] : memref<128x128xbf16, #tpu.memory_space<vmem>>, vector<128x128xbf16>
    %cst = arith.constant dense<0.000000e+00> : vector<16x128xf32>
    %7 = tpu.matmul %4, %6, %cst {dimension_numbers = #tpu.dot_dimension_numbers<[1], [0], [0], [1], [0, 0, 1, 1], [], []>} : vector<16x128xbf16>, vector<128x128xbf16>, vector<16x128xf32> -> vector<16x128xf32>
    %8 = arith.addf %5, %7 : vector<16x128xf32>
    %c0_6 = arith.constant 0 : index
    %c0_7 = arith.constant 0 : index
    %9 = vector.load %arg8[%c0_6, %c0_7] : memref<16x128xf32, #tpu.memory_space<vmem>>, vector<16x128xf32>
    tpu.vector_store %arg8[%c0_6, %c0_7], %8 {strides = array<i32>} : memref<16x128xf32, #tpu.memory_space<vmem>>, vector<16x128xf32>,
    %c0_i32_8 = arith.constant 0 : i32
    %10 = arith.cmpi eq, %arg1, %c0_i32_8 : i32
    %11 = arith.extui %10 : i1 to i32
    %c0_i32_9 = arith.constant 0 : i32
    %12 = arith.cmpi ne, %11, %c0_i32_9 : i32
    scf.if %12 {
      %c0_10 = arith.constant 0 : index
      %c0_11 = arith.constant 0 : index
      %13 = vector.load %arg8[%c0_10, %c0_11] : memref<16x128xf32, #tpu.memory_space<vmem>>, vector<16x128xf32>
      %c0_12 = arith.constant 0 : index
      %c0_13 = arith.constant 0 : index
      %14 = vector.load %arg4[%c0_12, %c0_13] : memref<1x128xf32, #tpu.memory_space<vmem>>, vector<1x128xf32>
      %15 = vector.broadcast %14 : vector<1x128xf32> to vector<16x128xf32>
      %16 = arith.addf %13, %15 : vector<16x128xf32>
      %cst_14 = arith.constant 0.000000e+00 : f32
      %17 = vector.broadcast %cst_14 : f32 to vector<16x128xf32>
      %18 = arith.maximumf %16, %17 : vector<16x128xf32>
      %19 = arith.truncf %18 : vector<16x128xf32> to vector<16x128xbf16>
      %c0_15 = arith.constant 0 : index
      %c0_16 = arith.constant 0 : index
      %20 = vector.load %arg5[%c0_15, %c0_16] : memref<128x128xbf16, #tpu.memory_space<vmem>>, vector<128x128xbf16>
      %cst_17 = arith.constant dense<0.000000e+00> : vector<16x128xf32>
      %21 = tpu.matmul %19, %20, %cst_17 {dimension_numbers = #tpu.dot_dimension_numbers<[1], [0], [0], [1], [0, 0, 1, 1], [], []>} : vector<16x128xbf16>, vector<128x128xbf16>, vector<16x128xf32> -> vector<16x128xf32>
      %c0_18 = arith.constant 0 : index
      %c0_19 = arith.constant 0 : index
      %22 = vector.load %arg6[%c0_18, %c0_19] : memref<1x128xf32, #tpu.memory_space<vmem>>, vector<1x128xf32>
      %23 = vector.broadcast %22 : vector<1x128xf32> to vector<16x128xf32>
      %24 = arith.addf %21, %23 : vector<16x128xf32>
      %cst_20 = arith.constant 0.000000e+00 : f32
      %25 = vector.broadcast %cst_20 : f32 to vector<16x128xf32>
      %26 = arith.maximumf %24, %25 : vector<16x128xf32>
      %27 = arith.truncf %26 : vector<16x128xf32> to vector<16x128xbf16>
      %c0_21 = arith.constant 0 : index
      %c0_22 = arith.constant 0 : index
      %28 = vector.load %arg7[%c0_21, %c0_22] : memref<16x128xbf16, #tpu.memory_space<vmem>>, vector<16x128xbf16>
      tpu.vector_store %arg7[%c0_21, %c0_22], %27 {strides = array<i32>} : memref<16x128xbf16, #tpu.memory_space<vmem>>, vector<16x128xbf16>,
    } else {
    }
    return
  }
  func.func @transform_0(%arg0: i32, %arg1: i32) -> (i32, i32) {
    %c0_i32 = arith.constant 0 : i32
    return %arg0, %arg1 : i32, i32
  }
  func.func @transform_1(%arg0: i32, %arg1: i32) -> (i32, i32) {
    %c0_i32 = arith.constant 0 : i32
    %c0_i32_0 = arith.constant 0 : i32
    return %arg1, %c0_i32 : i32, i32
  }
  func.func @transform_2(%arg0: i32, %arg1: i32) -> (i32, i32) {
    %c0_i32 = arith.constant 0 : i32
    %c0_i32_0 = arith.constant 0 : i32
    %c0_i32_1 = arith.constant 0 : i32
    return %c0_i32, %c0_i32_0 : i32, i32
  }
  func.func @transform_3(%arg0: i32, %arg1: i32) -> (i32, i32) {
    %c0_i32 = arith.constant 0 : i32
    %c0_i32_0 = arith.constant 0 : i32
    %c0_i32_1 = arith.constant 0 : i32
    return %c0_i32, %c0_i32_0 : i32, i32
  }
  func.func @transform_4(%arg0: i32, %arg1: i32) -> (i32, i32) {
    %c0_i32 = arith.constant 0 : i32
    %c0_i32_0 = arith.constant 0 : i32
    %c0_i32_1 = arith.constant 0 : i32
    return %c0_i32, %c0_i32_0 : i32, i32
  }
  func.func @transform_5(%arg0: i32, %arg1: i32) -> (i32, i32) {
    %c0_i32 = arith.constant 0 : i32
    %c0_i32_0 = arith.constant 0 : i32
    return %arg0, %c0_i32 : i32, i32
  }
}

module attributes {stable_mosaic.version = 11 : i64} {
  func.func @gfem_kernel(%arg0: i32, %arg1: i32, %arg2: memref<16x128xf32, #tpu.memory_space<vmem>>, %arg3: memref<128x128xbf16, #tpu.memory_space<vmem>>, %arg4: memref<1x128xf32, #tpu.memory_space<vmem>>, %arg5: memref<128x128xbf16, #tpu.memory_space<vmem>>, %arg6: memref<1x128xf32, #tpu.memory_space<vmem>>, %arg7: memref<16x128xbf16, #tpu.memory_space<vmem>>, %arg8: memref<16x128xf32, #tpu.memory_space<vmem>>) attributes {dimension_semantics = [#tpu.dimension_semantics<parallel>, #tpu.dimension_semantics<arbitrary>], iteration_bounds = array<i64: 1, 1>, scalar_prefetch = 0 : i64, scratch_operands = 1 : i64, tpu.core_type = #tpu.core_type<tc>, window_params = [{transform_indices = @transform_0, window_bounds = array<i64: 16, 128>}, {transform_indices = @transform_1, window_bounds = array<i64: 128, 128>}, {pipeline_mode = #tpu.pipeline_mode<synchronous>, transform_indices = @transform_2, window_bounds = array<i64: 1, 128>}, {pipeline_mode = #tpu.pipeline_mode<synchronous>, transform_indices = @transform_3, window_bounds = array<i64: 128, 128>}, {pipeline_mode = #tpu.pipeline_mode<synchronous>, transform_indices = @transform_4, window_bounds = array<i64: 1, 128>}, {transform_indices = @transform_5, window_bounds = array<i64: 16, 128>}]} {
    %c0_i32 = arith.constant 0 : i32
    %0 = arith.cmpi eq, %arg1, %c0_i32 : i32
    %1 = arith.extui %0 : i1 to i32
    %c0_i32_0 = arith.constant 0 : i32
    %2 = arith.cmpi ne, %1, %c0_i32_0 : i32
    scf.if %2 {
      %cst_10 = arith.constant 0.000000e+00 : f32
      %13 = vector.broadcast %cst_10 : f32 to vector<16x128xf32>
      %c0_11 = arith.constant 0 : index
      %c0_12 = arith.constant 0 : index
      %14 = vector.load %arg8[%c0_11, %c0_12] : memref<16x128xf32, #tpu.memory_space<vmem>>, vector<16x128xf32>
      tpu.vector_store %arg8[%c0_11, %c0_12], %13 {strides = array<i32>} : memref<16x128xf32, #tpu.memory_space<vmem>>, vector<16x128xf32>,
    } else {
    }
    %c0 = arith.constant 0 : index
    %c0_1 = arith.constant 0 : index
    %3 = vector.load %arg2[%c0, %c0_1] : memref<16x128xf32, #tpu.memory_space<vmem>>, vector<16x128xf32>
    %4 = arith.truncf %3 : vector<16x128xf32> to vector<16x128xbf16>
    %c0_2 = arith.constant 0 : index
    %c0_3 = arith.constant 0 : index
    %5 = vector.load %arg8[%c0_2, %c0_3] : memref<16x128xf32, #tpu.memory_space<vmem>>, vector<16x128xf32>
    %c0_4 = arith.constant 0 : index
    %c0_5 = arith.constant 0 : index
    %6 = vector.load %arg3[%c0_4, %c0_5] : memref<128x128xbf16, #tpu.memory_space<vmem>>, vector<128x128xbf16>
    %cst = arith.constant dense<0.000000e+00> : vector<16x128xf32>
    %7 = tpu.matmul %4, %6, %cst {dimension_numbers = #tpu.dot_dimension_numbers<[1], [0], [0], [1], [0, 0, 1, 1], [], []>} : vector<16x128xbf16>, vector<128x128xbf16>, vector<16x128xf32> -> vector<16x128xf32>
    %8 = arith.addf %5, %7 : vector<16x128xf32>
    %c0_6 = arith.constant 0 : index
    %c0_7 = arith.constant 0 : index
    %9 = vector.load %arg8[%c0_6, %c0_7] : memref<16x128xf32, #tpu.memory_space<vmem>>, vector<16x128xf32>
    tpu.vector_store %arg8[%c0_6, %c0_7], %8 {strides = array<i32>} : memref<16x128xf32, #tpu.memory_space<vmem>>, vector<16x128xf32>,
    %c0_i32_8 = arith.constant 0 : i32
    %10 = arith.cmpi eq, %arg1, %c0_i32_8 : i32
    %11 = arith.extui %10 : i1 to i32
    %c0_i32_9 = arith.constant 0 : i32
    %12 = arith.cmpi ne, %11, %c0_i32_9 : i32
    scf.if %12 {
      %c0_10 = arith.constant 0 : index
      %c0_11 = arith.constant 0 : index
      %13 = vector.load %arg8[%c0_10, %c0_11] : memref<16x128xf32, #tpu.memory_space<vmem>>, vector<16x128xf32>
      %c0_12 = arith.constant 0 : index
      %c0_13 = arith.constant 0 : index
      %14 = vector.load %arg4[%c0_12, %c0_13] : memref<1x128xf32, #tpu.memory_space<vmem>>, vector<1x128xf32>
      %15 = vector.broadcast %14 : vector<1x128xf32> to vector<16x128xf32>
      %16 = arith.addf %13, %15 : vector<16x128xf32>
      %cst_14 = arith.constant 0.000000e+00 : f32
      %17 = vector.broadcast %cst_14 : f32 to vector<16x128xf32>
      %18 = arith.maximumf %16, %17 : vector<16x128xf32>
      %19 = arith.truncf %18 : vector<16x128xf32> to vector<16x128xbf16>
      %c0_15 = arith.constant 0 : index
      %c0_16 = arith.constant 0 : index
      %20 = vector.load %arg5[%c0_15, %c0_16] : memref<128x128xbf16, #tpu.memory_space<vmem>>, vector<128x128xbf16>
      %cst_17 = arith.constant dense<0.000000e+00> : vector<16x128xf32>
      %21 = tpu.matmul %19, %20, %cst_17 {dimension_numbers = #tpu.dot_dimension_numbers<[1], [0], [0], [1], [0, 0, 1, 1], [], []>} : vector<16x128xbf16>, vector<128x128xbf16>, vector<16x128xf32> -> vector<16x128xf32>
      %c0_18 = arith.constant 0 : index
      %c0_19 = arith.constant 0 : index
      %22 = vector.load %arg6[%c0_18, %c0_19] : memref<1x128xf32, #tpu.memory_space<vmem>>, vector<1x128xf32>
      %23 = vector.broadcast %22 : vector<1x128xf32> to vector<16x128xf32>
      %24 = arith.addf %21, %23 : vector<16x128xf32>
      %cst_20 = arith.constant 0.000000e+00 : f32
      %25 = vector.broadcast %cst_20 : f32 to vector<16x128xf32>
      %26 = arith.maximumf %24, %25 : vector<16x128xf32>
      %27 = arith.truncf %26 : vector<16x128xf32> to vector<16x128xbf16>
      %c0_21 = arith.constant 0 : index
      %c0_22 = arith.constant 0 : index
      %28 = vector.load %arg7[%c0_21, %c0_22] : memref<16x128xbf16, #tpu.memory_space<vmem>>, vector<16x128xbf16>
      tpu.vector_store %arg7[%c0_21, %c0_22], %27 {strides = array<i32>} : memref<16x128xbf16, #tpu.memory_space<vmem>>, vector<16x128xbf16>,
    } else {
    }
    return
  }
  func.func @transform_0(%arg0: i32, %arg1: i32) -> (i32, i32) {
    %c0_i32 = arith.constant 0 : i32
    return %arg0, %arg1 : i32, i32
  }
  func.func @transform_1(%arg0: i32, %arg1: i32) -> (i32, i32) {
    %c0_i32 = arith.constant 0 : i32
    %c0_i32_0 = arith.constant 0 : i32
    return %arg1, %c0_i32 : i32, i32
  }
  func.func @transform_2(%arg0: i32, %arg1: i32) -> (i32, i32) {
    %c0_i32 = arith.constant 0 : i32
    %c0_i32_0 = arith.constant 0 : i32
    %c0_i32_1 = arith.constant 0 : i32
    return %c0_i32, %c0_i32_0 : i32, i32
  }
  func.func @transform_3(%arg0: i32, %arg1: i32) -> (i32, i32) {
    %c0_i32 = arith.constant 0 : i32
    %c0_i32_0 = arith.constant 0 : i32
    %c0_i32_1 = arith.constant 0 : i32
    return %c0_i32, %c0_i32_0 : i32, i32
  }
  func.func @transform_4(%arg0: i32, %arg1: i32) -> (i32, i32) {
    %c0_i32 = arith.constant 0 : i32
    %c0_i32_0 = arith.constant 0 : i32
    %c0_i32_1 = arith.constant 0 : i32
    return %c0_i32, %c0_i32_0 : i32, i32
  }
  func.func @transform_5(%arg0: i32, %arg1: i32) -> (i32, i32) {
    %c0_i32 = arith.constant 0 : i32
    %c0_i32_0 = arith.constant 0 : i32
    return %arg0, %c0_i32 : i32, i32
  }
}

</mosaic_0001>

<llo_original>
// kernel: tpu_custom_call.1
$region0: #{tpu_custom_call.1}
  #allocation0 [shape = 'u32[]', space=smem, size = 0x4, offset = 0x4, fixed_abs, tag = 'smem constant byte address 0x4 - core index']
  #allocation1 [shape = 'u32[144,128]{1,0:T(1,128)}', space=vmem, size = 0x12000, scoped, tag = 'internal scratch']
  #allocation2 [shape = 'f32[16,128]{1,0:T(8,128)}', space=vmem, size = 0x2000, scoped, tag = 'scratch operand']
  %s0 = inlined_call_operand.hbm [shape: f32[2,128], index: 0, kind: input, shape index: {}]
  %s1 = inlined_call_operand.hbm [shape: bf16[128,128], index: 1, kind: input, shape index: {}]
  %s2 = inlined_call_operand.vmem [shape: f32[1,128], index: 2, kind: input, shape index: {}]
  %s3 = inlined_call_operand.hbm [shape: bf16[128,128], index: 3, kind: input, shape index: {}]
  %s4 = inlined_call_operand.vmem [shape: f32[1,128], index: 4, kind: input, shape index: {}]
  %s5 = inlined_call_operand.hbm [shape: bf16[2,128], index: 5, kind: output, shape index: {}]
  %s6 = sld [smem:[#allocation0]]
  $region50: #{tpu_custom_call.1} parent=0
    _
  %s8 = ssub.s32 1, %s6
  %s9 = scalar_select 0, %s8, %s6
  $region1: #{tpu_custom_call.1} parent=0
    #allocation3 [shape = 'u8[8192]{0}', space=vmem, size = 0x2000, scoped, tag = 'input window, operand 0, single buffered']
    #allocation4 [shape = 's32[1]{0}', space=sflag, size = 0x4, scoped, tag = 'scoped memory for tpu_custom_call.1']
    #allocation5 [shape = 's32[1]{0}', space=sflag, size = 0x4, scoped, tag = 'scoped memory for tpu_custom_call.1']
    #allocation6 [shape = 'u8[32768]{0}', space=vmem, size = 0x8000, scoped, tag = 'input window, operand 1, single buffered']
    #allocation7 [shape = 's32[1]{0}', space=sflag, size = 0x4, scoped, tag = 'scoped memory for tpu_custom_call.1']
    #allocation8 [shape = 'u8[32768]{0}', space=vmem, size = 0x8000, scoped, tag = 'input window, operand 3, single buffered']
    #allocation9 [shape = 'u8[4096]{0}', space=vmem, size = 0x1000, scoped, tag = 'output window, operand 0, single buffered']
    %10 = vsyncpa [#allocation4], 0
    %11 = vsyncpa [#allocation7], 0
    %12 = vsyncpa [#allocation5], 0
    // Predicated region
    $region2: #{tpu_custom_call.1} parent=1 // pred_check
      _
    $region3: #{tpu_custom_call.1} parent=1 // pred_check_branch
      %14 = sbr.rel (0) target = $region5
    $region4: #{tpu_custom_call.1} parent=1 // pred_region
      %s16 = ssub.s32 256, 32
      %17 = vsyncadd [#allocation4], %s16
      %s18 = sshll.u32 [#allocation3], 4
      %s19 = int_to_ptr.vmem [resolvable:$true] %s18
      %24 = dma.hbm_to_vmem [thread:$0]  %s0, 32, %s19, [#allocation4], 32, 32, 2
    $region5: #{tpu_custom_call.1} parent=1 // pred_fallthru
      _
    // Predicated region
    $region6: #{tpu_custom_call.1} parent=1 // pred_check
      _
    $region7: #{tpu_custom_call.1} parent=1 // pred_check_branch
      %26 = sbr.rel (0) target = $region9
    $region8: #{tpu_custom_call.1} parent=1 // pred_region
      %s28 = ssub.s32 1024, 1024
      %29 = vsyncadd [#allocation7], %s28
      %s30 = sshll.u32 [#allocation6], 4
      %s31 = int_to_ptr.vmem [resolvable:$true] %s30
      %36 = dma.hbm_to_vmem [thread:$0]  %s1, 1024, %s31, [#allocation7], 64, 64, 4
    $region9: #{tpu_custom_call.1} parent=1 // pred_fallthru
      _
    // Predicated region
    $region10: #{tpu_custom_call.1} parent=1 // pred_check
      _
    $region11: #{tpu_custom_call.1} parent=1 // pred_check_branch
      %38 = sbr.rel (0) target = $region13
    $region12: #{tpu_custom_call.1} parent=1 // pred_region
      _
    $region13: #{tpu_custom_call.1} parent=1 // pred_fallthru
      _
    // Predicated region
    $region14: #{tpu_custom_call.1} parent=1 // pred_check
      _
    $region15: #{tpu_custom_call.1} parent=1 // pred_check_branch
      %40 = sbr.rel (0) target = $region17
    $region16: #{tpu_custom_call.1} parent=1 // pred_region
      %s42 = ssub.s32 1024, 1024
      %43 = vsyncadd [#allocation7], %s42
      %s44 = sshll.u32 [#allocation8], 4
      %s45 = int_to_ptr.vmem [resolvable:$true] %s44
      %50 = dma.hbm_to_vmem [thread:$0]  %s3, 1024, %s45, [#allocation7], 64, 64, 4
    $region17: #{tpu_custom_call.1} parent=1 // pred_fallthru
      _
    // Predicated region
    $region18: #{tpu_custom_call.1} parent=1 // pred_check
      _
    $region19: #{tpu_custom_call.1} parent=1 // pred_check_branch
      %52 = sbr.rel (0) target = $region21
    $region20: #{tpu_custom_call.1} parent=1 // pred_region
      _
    $region21: #{tpu_custom_call.1} parent=1 // pred_fallthru
      _
    // Predicated region
    $region22: #{tpu_custom_call.1} parent=1 // pred_check
      _
    $region23: #{tpu_custom_call.1} parent=1 // pred_check_branch
      %54 = sbr.rel (0) target = $region25
    $region24: #{tpu_custom_call.1} parent=1 // pred_region
      %55 = dma.done [#allocation4], 256
    $region25: #{tpu_custom_call.1} parent=1 // pred_fallthru
      _
    // Predicated region
    $region26: #{tpu_custom_call.1} parent=1 // pred_check
      _
    $region27: #{tpu_custom_call.1} parent=1 // pred_check_branch
      %57 = sbr.rel (0) target = $region29
    $region28: #{tpu_custom_call.1} parent=1 // pred_region
      %58 = dma.done [#allocation7], 1024
    $region29: #{tpu_custom_call.1} parent=1 // pred_fallthru
      _
    // Predicated region
    $region30: #{tpu_custom_call.1} parent=1 // pred_check
      _
    $region31: #{tpu_custom_call.1} parent=1 // pred_check_branch
      %60 = sbr.rel (0) target = $region33
    $region32: #{tpu_custom_call.1} parent=1 // pred_region
      %61 = dma.done [#allocation7], 1024
    $region33: #{tpu_custom_call.1} parent=1 // pred_fallthru
      _
    %p63 = scmp.eq.s32.totalorder 0, 0
    // Predicated region
    $region34: #{tpu_custom_call.1} parent=1 // pred_check
      %p64 = pneg %p63
    $region35: #{tpu_custom_call.1} parent=1 // pred_check_branch
      %66 = sbr.rel (%p64) target = $region37
    $region36: #{tpu_custom_call.1} parent=1 // pred_region
      %67 = vst [vmem:[#allocation2] sm:$0xff] 0.0
      %68 = vst [vmem:[#allocation2 + $0x8] sm:$0xff] 0.0
    $region37: #{tpu_custom_call.1} parent=1 // pred_fallthru
      _
    %v69 = vld [vmem:[#allocation3] sm:$0xff]
    %v70 = vld [vmem:[#allocation3 + $0x8] sm:$0xff]
    %v71 = vpack.c.bf16 %v70, %v69
    %v72 = vld [vmem:[#allocation2] sm:$0xff]
    %v73 = vld [vmem:[#allocation2 + $0x8] sm:$0xff]
    %v74 = vld [vmem:[#allocation6] sm:$0xf]
    %v75 = vld [vmem:[#allocation6 + $0x4] sm:$0xf]
    %v76 = vld [vmem:[#allocation6 + $0x8] sm:$0xf]
    %v77 = vld [vmem:[#allocation6 + $0xc] sm:$0xf]
    %v78 = vld [vmem:[#allocation6 + $0x10] sm:$0xf]
    %v79 = vld [vmem:[#allocation6 + $0x14] sm:$0xf]
    %v80 = vld [vmem:[#allocation6 + $0x18] sm:$0xf]
    %v81 = vld [vmem:[#allocation6 + $0x1c] sm:$0xf]
    %v82 = vld [vmem:[#allocation6 + $0x20] sm:$0xf]
    %v83 = vld [vmem:[#allocation6 + $0x24] sm:$0xf]
    %v84 = vld [vmem:[#allocation6 + $0x28] sm:$0xf]
    %v85 = vld [vmem:[#allocation6 + $0x2c] sm:$0xf]
    %v86 = vld [vmem:[#allocation6 + $0x30] sm:$0xf]
    %v87 = vld [vmem:[#allocation6 + $0x34] sm:$0xf]
    %v88 = vld [vmem:[#allocation6 + $0x38] sm:$0xf]
    %v89 = vld [vmem:[#allocation6 + $0x3c] sm:$0xf]
    %v106 = vunpack.c.l.b16 %v74
    %v107 = vunpack.c.l.b16 %v75
    %v108 = vunpack.c.l.b16 %v76
    %v109 = vunpack.c.l.b16 %v77
    %v110 = vunpack.c.l.b16 %v78
    %v111 = vunpack.c.l.b16 %v79
    %v112 = vunpack.c.l.b16 %v80
    %v113 = vunpack.c.l.b16 %v81
    %v114 = vunpack.c.l.b16 %v82
    %v115 = vunpack.c.l.b16 %v83
    %v116 = vunpack.c.l.b16 %v84
    %v117 = vunpack.c.l.b16 %v85
    %v118 = vunpack.c.l.b16 %v86
    %v119 = vunpack.c.l.b16 %v87
    %v120 = vunpack.c.l.b16 %v88
    %v121 = vunpack.c.l.b16 %v89
    %v122 = vpack.c.b16 %v107, %v106
    %v123 = vpack.c.b16 %v109, %v108
    %v124 = vpack.c.b16 %v111, %v110
    %v125 = vpack.c.b16 %v113, %v112
    %v126 = vpack.c.b16 %v115, %v114
    %v127 = vpack.c.b16 %v117, %v116
    %v128 = vpack.c.b16 %v119, %v118
    %v129 = vpack.c.b16 %v121, %v120
    %138 = vmatprep.subr.bf16.mxu0 0
    %139 = vmatpush1.bf16.msra.mxu0 %v129
    %140 = vmatprep.subr.bf16.mxu0 0
    %141 = vmatpush1.bf16.msra.mxu0 %v128
    %142 = vmatprep.subr.bf16.mxu0 0
    %143 = vmatpush1.bf16.msra.mxu0 %v127
    %144 = vmatprep.subr.bf16.mxu0 0
    %145 = vmatpush1.bf16.msra.mxu0 %v126
    %146 = vmatprep.subr.bf16.mxu0 0
    %147 = vmatpush1.bf16.msra.mxu0 %v125
    %148 = vmatprep.subr.bf16.mxu0 0
    %149 = vmatpush1.bf16.msra.mxu0 %v124
    %150 = vmatprep.subr.bf16.mxu0 0
    %151 = vmatpush1.bf16.msra.mxu0 %v123
    %152 = vmatprep.subr.bf16.mxu0 0
    %153 = vmatpush1.bf16.msra.mxu0 %v122
    %154 = vmatprep.subr.bf16.mxu0 0
    %155 = vmatpush2.bf16.msra.mxu0 0
    %156 = vmatprep.subr.bf16.mxu0 0
    %157 = vmatpush2.bf16.msra.mxu0 0
    %158 = vmatprep.subr.bf16.mxu0 0
    %159 = vmatpush2.bf16.msra.mxu0 0
    %160 = vmatprep.subr.bf16.mxu0 0
    %161 = vmatpush2.bf16.msra.mxu0 0
    %162 = vmatprep.subr.bf16.mxu0 0
    %163 = vmatpush2.bf16.msra.mxu0 0
    %164 = vmatprep.subr.bf16.mxu0 0
    %165 = vmatpush2.bf16.msra.mxu0 0
    %166 = vmatprep.subr.bf16.mxu0 0
    %167 = vmatpush2.bf16.msra.mxu0 0
    %168 = vmatprep.subr.bf16.mxu0 0
    %169 = vmatpush2.bf16.msra.mxu0 0
    %170 = vmatprep.mubr.bf16.mxu0 0
    %171 = vmatmul.mubr.bf16.gmra.mxu0 %v71
    %v172 = vpop.f32.mrf.mxu0
    %v173 = vadd.f32 0.0, %v172
    %v174 = vpop.f32.mrf.mxu0
    %v175 = vpop.f32.mrf.mxu0
    %v176 = vadd.f32 0.0, %v175
    %v177 = vpop.f32.mrf.mxu0
    %178 = vdwg.mxu0
    %v179 = vadd.f32 %v72, %v173
    %v180 = vadd.f32 %v73, %v176
    %181 = vst [vmem:[#allocation2] sm:$0xff] %v179
    %182 = vst [vmem:[#allocation2 + $0x8] sm:$0xff] %v180
    // Predicated region
    $region38: #{tpu_custom_call.1} parent=1 // pred_check
      %p183 = pneg %p63
    $region39: #{tpu_custom_call.1} parent=1 // pred_check_branch
      %185 = sbr.rel (%p183) target = $region41
    $region40: #{tpu_custom_call.1} parent=1 // pred_region
      %v186 = vld [vmem:[#allocation2] sm:$0xff]
      %v187 = vld [vmem:[#allocation2 + $0x8] sm:$0xff]
      %v188 = vld [vmem:[%s2] sm:$0x1]
      %v190 = vlaneseq
      %v191 = vshrl.u32 %v190, 7
      %v192 = vsub.s32 0, %v191
      %v193 = vrot.slane %v188, %v192
      %v195 = vadd.f32 %v186, %v193
      %v196 = vadd.f32 %v187, %v193
      %v197 = vmax.f32 %v195, 0.0
      %v198 = vmax.f32 %v196, 0.0
      %v199 = vpack.c.bf16 %v198, %v197
      %v200 = vld [vmem:[#allocation8] sm:$0xf]
      %v201 = vld [vmem:[#allocation8 + $0x4] sm:$0xf]
      %v202 = vld [vmem:[#allocation8 + $0x8] sm:$0xf]
      %v203 = vld [vmem:[#allocation8 + $0xc] sm:$0xf]
      %v204 = vld [vmem:[#allocation8 + $0x10] sm:$0xf]
      %v205 = vld [vmem:[#allocation8 + $0x14] sm:$0xf]
      %v206 = vld [vmem:[#allocation8 + $0x18] sm:$0xf]
      %v207 = vld [vmem:[#allocation8 + $0x1c] sm:$0xf]
      %v208 = vld [vmem:[#allocation8 + $0x20] sm:$0xf]
      %v209 = vld [vmem:[#allocation8 + $0x24] sm:$0xf]
      %v210 = vld [vmem:[#allocation8 + $0x28] sm:$0xf]
      %v211 = vld [vmem:[#allocation8 + $0x2c] sm:$0xf]
      %v212 = vld [vmem:[#allocation8 + $0x30] sm:$0xf]
      %v213 = vld [vmem:[#allocation8 + $0x34] sm:$0xf]
      %v214 = vld [vmem:[#allocation8 + $0x38] sm:$0xf]
      %v215 = vld [vmem:[#allocation8 + $0x3c] sm:$0xf]
      %v216 = vld [vmem:[%s4] sm:$0x1]
      %v218 = vlaneseq
      %v219 = vshrl.u32 %v218, 7
      %v220 = vsub.s32 0, %v219
      %v221 = vrot.slane %v216, %v220
      %v239 = vunpack.c.l.b16 %v200
      %v240 = vunpack.c.l.b16 %v201
      %v241 = vunpack.c.l.b16 %v202
      %v242 = vunpack.c.l.b16 %v203
      %v243 = vunpack.c.l.b16 %v204
      %v244 = vunpack.c.l.b16 %v205
      %v245 = vunpack.c.l.b16 %v206
      %v246 = vunpack.c.l.b16 %v207
      %v247 = vunpack.c.l.b16 %v208
      %v248 = vunpack.c.l.b16 %v209
      %v249 = vunpack.c.l.b16 %v210
      %v250 = vunpack.c.l.b16 %v211
      %v251 = vunpack.c.l.b16 %v212
      %v252 = vunpack.c.l.b16 %v213
      %v253 = vunpack.c.l.b16 %v214
      %v254 = vunpack.c.l.b16 %v215
      %v255 = vpack.c.b16 %v240, %v239
      %v256 = vpack.c.b16 %v242, %v241
      %v257 = vpack.c.b16 %v244, %v243
      %v258 = vpack.c.b16 %v246, %v245
      %v259 = vpack.c.b16 %v248, %v247
      %v260 = vpack.c.b16 %v250, %v249
      %v261 = vpack.c.b16 %v252, %v251
      %v262 = vpack.c.b16 %v254, %v253
      %271 = vmatprep.subr.bf16.mxu0 0
      %272 = vmatpush1.bf16.msra.mxu0 %v262
      %273 = vmatprep.subr.bf16.mxu0 0
      %274 = vmatpush1.bf16.msra.mxu0 %v261
      %275 = vmatprep.subr.bf16.mxu0 0
      %276 = vmatpush1.bf16.msra.mxu0 %v260
      %277 = vmatprep.subr.bf16.mxu0 0
      %278 = vmatpush1.bf16.msra.mxu0 %v259
      %279 = vmatprep.subr.bf16.mxu0 0
      %280 = vmatpush1.bf16.msra.mxu0 %v258
      %281 = vmatprep.subr.bf16.mxu0 0
      %282 = vmatpush1.bf16.msra.mxu0 %v257
      %283 = vmatprep.subr.bf16.mxu0 0
      %284 = vmatpush1.bf16.msra.mxu0 %v256
      %285 = vmatprep.subr.bf16.mxu0 0
      %286 = vmatpush1.bf16.msra.mxu0 %v255
      %287 = vmatprep.subr.bf16.mxu0 0
      %288 = vmatpush2.bf16.msra.mxu0 0
      %289 = vmatprep.subr.bf16.mxu0 0
      %290 = vmatpush2.bf16.msra.mxu0 0
      %291 = vmatprep.subr.bf16.mxu0 0
      %292 = vmatpush2.bf16.msra.mxu0 0
      %293 = vmatprep.subr.bf16.mxu0 0
      %294 = vmatpush2.bf16.msra.mxu0 0
      %295 = vmatprep.subr.bf16.mxu0 0
      %296 = vmatpush2.bf16.msra.mxu0 0
      %297 = vmatprep.subr.bf16.mxu0 0
      %298 = vmatpush2.bf16.msra.mxu0 0
      %299 = vmatprep.subr.bf16.mxu0 0
      %300 = vmatpush2.bf16.msra.mxu0 0
      %301 = vmatprep.subr.bf16.mxu0 0
      %302 = vmatpush2.bf16.msra.mxu0 0
      %303 = vmatprep.mubr.bf16.mxu0 0
      %304 = vmatmul.mubr.bf16.gmra.mxu0 %v199
      %v305 = vpop.f32.mrf.mxu0
      %v306 = vadd.f32 %v221, %v305
      %v307 = vpop.f32.mrf.mxu0
      %v308 = vpop.f32.mrf.mxu0
      %v309 = vadd.f32 %v221, %v308
      %v310 = vpop.f32.mrf.mxu0
      %311 = vdwg.mxu0
      %v312 = vmax.f32 %v306, 0.0
      %v313 = vmax.f32 %v309, 0.0
      %v314 = vpack.c.bf16 %v313, %v312
      %v316 = vcombine.high %v314, %v314
      %v318 = vunpack.c.l.s4 1966171168
      %v319 = vunpack.c.0.s8 %v318
      %v320 = vlaneseq
      %v321 = vshrl.u32 %v320, 7
      %v322 = vsub.s32 %v319, %v321
      %v323 = vrot.slane %v314, %v322
      %v325 = vunpack.c.l.s4 1966171168
      %v326 = vunpack.c.0.s8 %v325
      %v327 = vlaneseq
      %v328 = vshrl.u32 %v327, 7
      %v329 = vsub.s32 %v326, %v328
      %v330 = vrot.slane %v316, %v329
      %v331 = vcombine.high %v323, %v323
      %v332 = vcombine.high %v330, %v330
      %v334 = vunpack.c.l.s4 1966171168
      %v335 = vunpack.c.0.s8 %v334
      %v336 = vlaneseq
      %v337 = vshrl.u32 %v336, 7
      %v338 = vsub.s32 %v335, %v337
      %v339 = vrot.slane %v323, %v338
      %v341 = vunpack.c.l.s4 1966171168
      %v342 = vunpack.c.0.s8 %v341
      %v343 = vlaneseq
      %v344 = vshrl.u32 %v343, 7
      %v345 = vsub.s32 %v342, %v344
      %v346 = vrot.slane %v330, %v345
      %v348 = vunpack.c.l.s4 1966171168
      %v349 = vunpack.c.0.s8 %v348
      %v350 = vlaneseq
      %v351 = vshrl.u32 %v350, 7
      %v352 = vsub.s32 %v349, %v351
      %v353 = vrot.slane %v331, %v352
      %v355 = vunpack.c.l.s4 1966171168
      %v356 = vunpack.c.0.s8 %v355
      %v357 = vlaneseq
      %v358 = vshrl.u32 %v357, 7
      %v359 = vsub.s32 %v356, %v358
      %v360 = vrot.slane %v332, %v359
      %v361 = vcombine.high %v339, %v339
      %v362 = vcombine.high %v346, %v346
      %v363 = vcombine.high %v353, %v353
      %v364 = vcombine.high %v360, %v360
      %373 = vst [vmem:[#allocation9] sm:$0x1] %v339
      %374 = vst [vmem:[#allocation9 + $0x1] sm:$0x1] %v353
      %375 = vst [vmem:[#allocation9 + $0x2] sm:$0x1] %v361
      %376 = vst [vmem:[#allocation9 + $0x3] sm:$0x1] %v363
      %377 = vst [vmem:[#allocation9 + $0x4] sm:$0x1] %v346
      %378 = vst [vmem:[#allocation9 + $0x5] sm:$0x1] %v360
      %379 = vst [vmem:[#allocation9 + $0x6] sm:$0x1] %v362
      %380 = vst [vmem:[#allocation9 + $0x7] sm:$0x1] %v364
    $region41: #{tpu_custom_call.1} parent=1 // pred_fallthru
      _
    // Predicated region
    $region42: #{tpu_custom_call.1} parent=1 // pred_check
      _
    $region43: #{tpu_custom_call.1} parent=1 // pred_check_branch
      %382 = sbr.rel (0) target = $region45
    $region44: #{tpu_custom_call.1} parent=1 // pred_region
      %s384 = ssub.s32 128, 16
      %385 = vsyncadd [#allocation5], %s384
      %s386 = sshll.u32 [#allocation9], 4
      %s387 = int_to_ptr.vmem [resolvable:$true] %s386
      %392 = dma.vmem_to_hbm [thread:$0]  %s387, 16, %s5, [#allocation5], 16, 16, 1
    $region45: #{tpu_custom_call.1} parent=1 // pred_fallthru
      _
    // Predicated region
    $region46: #{tpu_custom_call.1} parent=1 // pred_check
      _
    $region47: #{tpu_custom_call.1} parent=1 // pred_check_branch
      %394 = sbr.rel (0) target = $region49
    $region48: #{tpu_custom_call.1} parent=1 // pred_region
      %395 = dma.done [#allocation5], 128
    $region49: #{tpu_custom_call.1} parent=1 // pred_fallthru
      _
    %396 = vsyncpa [#allocation4], 1
    %397 = vsyncpa [#allocation7], 1
    %398 = vsyncpa [#allocation5], 1

// kernel: tpu_custom_call.1
$region0: #{tpu_custom_call.1}
  #allocation0 [shape = 'u32[]', space=smem, size = 0x4, offset = 0x4, fixed_abs, tag = 'smem constant byte address 0x4 - core index']
  #allocation1 [shape = 'u32[144,128]{1,0:T(1,128)}', space=vmem, size = 0x12000, scoped, tag = 'internal scratch']
  #allocation2 [shape = 'f32[16,128]{1,0:T(8,128)}', space=vmem, size = 0x2000, scoped, tag = 'scratch operand']
  %s0 = inlined_call_operand.hbm [shape: f32[2,128], index: 0, kind: input, shape index: {}]
  %s1 = inlined_call_operand.hbm [shape: bf16[128,128], index: 1, kind: input, shape index: {}]
  %s2 = inlined_call_operand.vmem [shape: f32[1,128], index: 2, kind: input, shape index: {}]
  %s3 = inlined_call_operand.hbm [shape: bf16[128,128], index: 3, kind: input, shape index: {}]
  %s4 = inlined_call_operand.vmem [shape: f32[1,128], index: 4, kind: input, shape index: {}]
  %s5 = inlined_call_operand.hbm [shape: bf16[2,128], index: 5, kind: output, shape index: {}]
  %s6 = sld [smem:[#allocation0]]
  $region50: #{tpu_custom_call.1} parent=0
    _
  %s8 = ssub.s32 1, %s6
  %s9 = scalar_select 0, %s8, %s6
  $region1: #{tpu_custom_call.1} parent=0
    #allocation3 [shape = 'u8[8192]{0}', space=vmem, size = 0x2000, scoped, tag = 'input window, operand 0, single buffered']
    #allocation4 [shape = 's32[1]{0}', space=sflag, size = 0x4, scoped, tag = 'scoped memory for tpu_custom_call.1']
    #allocation5 [shape = 's32[1]{0}', space=sflag, size = 0x4, scoped, tag = 'scoped memory for tpu_custom_call.1']
    #allocation6 [shape = 'u8[32768]{0}', space=vmem, size = 0x8000, scoped, tag = 'input window, operand 1, single buffered']
    #allocation7 [shape = 's32[1]{0}', space=sflag, size = 0x4, scoped, tag = 'scoped memory for tpu_custom_call.1']
    #allocation8 [shape = 'u8[32768]{0}', space=vmem, size = 0x8000, scoped, tag = 'input window, operand 3, single buffered']
    #allocation9 [shape = 'u8[4096]{0}', space=vmem, size = 0x1000, scoped, tag = 'output window, operand 0, single buffered']
    %10 = vsyncpa [#allocation4], 0
    %11 = vsyncpa [#allocation7], 0
    %12 = vsyncpa [#allocation5], 0
    // Predicated region
    $region2: #{tpu_custom_call.1} parent=1 // pred_check
      _
    $region3: #{tpu_custom_call.1} parent=1 // pred_check_branch
      %14 = sbr.rel (0) target = $region5
    $region4: #{tpu_custom_call.1} parent=1 // pred_region
      %s16 = ssub.s32 256, 32
      %17 = vsyncadd [#allocation4], %s16
      %s18 = sshll.u32 [#allocation3], 4
      %s19 = int_to_ptr.vmem [resolvable:$true] %s18
      %24 = dma.hbm_to_vmem [thread:$0]  %s0, 32, %s19, [#allocation4], 32, 32, 2
    $region5: #{tpu_custom_call.1} parent=1 // pred_fallthru
      _
    // Predicated region
    $region6: #{tpu_custom_call.1} parent=1 // pred_check
      _
    $region7: #{tpu_custom_call.1} parent=1 // pred_check_branch
      %26 = sbr.rel (0) target = $region9
    $region8: #{tpu_custom_call.1} parent=1 // pred_region
      %s28 = ssub.s32 1024, 1024
      %29 = vsyncadd [#allocation7], %s28
      %s30 = sshll.u32 [#allocation6], 4
      %s31 = int_to_ptr.vmem [resolvable:$true] %s30
      %36 = dma.hbm_to_vmem [thread:$0]  %s1, 1024, %s31, [#allocation7], 64, 64, 4
    $region9: #{tpu_custom_call.1} parent=1 // pred_fallthru
      _
    // Predicated region
    $region10: #{tpu_custom_call.1} parent=1 // pred_check
      _
    $region11: #{tpu_custom_call.1} parent=1 // pred_check_branch
      %38 = sbr.rel (0) target = $region13
    $region12: #{tpu_custom_call.1} parent=1 // pred_region
      _
    $region13: #{tpu_custom_call.1} parent=1 // pred_fallthru
      _
    // Predicated region
    $region14: #{tpu_custom_call.1} parent=1 // pred_check
      _
    $region15: #{tpu_custom_call.1} parent=1 // pred_check_branch
      %40 = sbr.rel (0) target = $region17
    $region16: #{tpu_custom_call.1} parent=1 // pred_region
      %s42 = ssub.s32 1024, 1024
      %43 = vsyncadd [#allocation7], %s42
      %s44 = sshll.u32 [#allocation8], 4
      %s45 = int_to_ptr.vmem [resolvable:$true] %s44
      %50 = dma.hbm_to_vmem [thread:$0]  %s3, 1024, %s45, [#allocation7], 64, 64, 4
    $region17: #{tpu_custom_call.1} parent=1 // pred_fallthru
      _
    // Predicated region
    $region18: #{tpu_custom_call.1} parent=1 // pred_check
      _
    $region19: #{tpu_custom_call.1} parent=1 // pred_check_branch
      %52 = sbr.rel (0) target = $region21
    $region20: #{tpu_custom_call.1} parent=1 // pred_region
      _
    $region21: #{tpu_custom_call.1} parent=1 // pred_fallthru
      _
    // Predicated region
    $region22: #{tpu_custom_call.1} parent=1 // pred_check
      _
    $region23: #{tpu_custom_call.1} parent=1 // pred_check_branch
      %54 = sbr.rel (0) target = $region25
    $region24: #{tpu_custom_call.1} parent=1 // pred_region
      %55 = dma.done [#allocation4], 256
    $region25: #{tpu_custom_call.1} parent=1 // pred_fallthru
      _
    // Predicated region
    $region26: #{tpu_custom_call.1} parent=1 // pred_check
      _
    $region27: #{tpu_custom_call.1} parent=1 // pred_check_branch
      %57 = sbr.rel (0) target = $region29
    $region28: #{tpu_custom_call.1} parent=1 // pred_region
      %58 = dma.done [#allocation7], 1024
    $region29: #{tpu_custom_call.1} parent=1 // pred_fallthru
      _
    // Predicated region
    $region30: #{tpu_custom_call.1} parent=1 // pred_check
      _
    $region31: #{tpu_custom_call.1} parent=1 // pred_check_branch
      %60 = sbr.rel (0) target = $region33
    $region32: #{tpu_custom_call.1} parent=1 // pred_region
      %61 = dma.done [#allocation7], 1024
    $region33: #{tpu_custom_call.1} parent=1 // pred_fallthru
      _
    %p63 = scmp.eq.s32.totalorder 0, 0
    // Predicated region
    $region34: #{tpu_custom_call.1} parent=1 // pred_check
      %p64 = pneg %p63
    $region35: #{tpu_custom_call.1} parent=1 // pred_check_branch
      %66 = sbr.rel (%p64) target = $region37
    $region36: #{tpu_custom_call.1} parent=1 // pred_region
      %67 = vst [vmem:[#allocation2] sm:$0xff] 0.0
      %68 = vst [vmem:[#allocation2 + $0x8] sm:$0xff] 0.0
    $region37: #{tpu_custom_call.1} parent=1 // pred_fallthru
      _
    %v69 = vld [vmem:[#allocation3] sm:$0xff]
    %v70 = vld [vmem:[#allocation3 + $0x8] sm:$0xff]
    %v71 = vpack.c.bf16 %v70, %v69
    %v72 = vld [vmem:[#allocation2] sm:$0xff]
    %v73 = vld [vmem:[#allocation2 + $0x8] sm:$0xff]
    %v74 = vld [vmem:[#allocation6] sm:$0xf]
    %v75 = vld [vmem:[#allocation6 + $0x4] sm:$0xf]
    %v76 = vld [vmem:[#allocation6 + $0x8] sm:$0xf]
    %v77 = vld [vmem:[#allocation6 + $0xc] sm:$0xf]
    %v78 = vld [vmem:[#allocation6 + $0x10] sm:$0xf]
    %v79 = vld [vmem:[#allocation6 + $0x14] sm:$0xf]
    %v80 = vld [vmem:[#allocation6 + $0x18] sm:$0xf]
    %v81 = vld [vmem:[#allocation6 + $0x1c] sm:$0xf]
    %v82 = vld [vmem:[#allocation6 + $0x20] sm:$0xf]
    %v83 = vld [vmem:[#allocation6 + $0x24] sm:$0xf]
    %v84 = vld [vmem:[#allocation6 + $0x28] sm:$0xf]
    %v85 = vld [vmem:[#allocation6 + $0x2c] sm:$0xf]
    %v86 = vld [vmem:[#allocation6 + $0x30] sm:$0xf]
    %v87 = vld [vmem:[#allocation6 + $0x34] sm:$0xf]
    %v88 = vld [vmem:[#allocation6 + $0x38] sm:$0xf]
    %v89 = vld [vmem:[#allocation6 + $0x3c] sm:$0xf]
    %v106 = vunpack.c.l.b16 %v74
    %v107 = vunpack.c.l.b16 %v75
    %v108 = vunpack.c.l.b16 %v76
    %v109 = vunpack.c.l.b16 %v77
    %v110 = vunpack.c.l.b16 %v78
    %v111 = vunpack.c.l.b16 %v79
    %v112 = vunpack.c.l.b16 %v80
    %v113 = vunpack.c.l.b16 %v81
    %v114 = vunpack.c.l.b16 %v82
    %v115 = vunpack.c.l.b16 %v83
    %v116 = vunpack.c.l.b16 %v84
    %v117 = vunpack.c.l.b16 %v85
    %v118 = vunpack.c.l.b16 %v86
    %v119 = vunpack.c.l.b16 %v87
    %v120 = vunpack.c.l.b16 %v88
    %v121 = vunpack.c.l.b16 %v89
    %v122 = vpack.c.b16 %v107, %v106
    %v123 = vpack.c.b16 %v109, %v108
    %v124 = vpack.c.b16 %v111, %v110
    %v125 = vpack.c.b16 %v113, %v112
    %v126 = vpack.c.b16 %v115, %v114
    %v127 = vpack.c.b16 %v117, %v116
    %v128 = vpack.c.b16 %v119, %v118
    %v129 = vpack.c.b16 %v121, %v120
    %138 = vmatprep.subr.bf16.mxu0 0
    %139 = vmatpush1.bf16.msra.mxu0 %v129
    %140 = vmatprep.subr.bf16.mxu0 0
    %141 = vmatpush1.bf16.msra.mxu0 %v128
    %142 = vmatprep.subr.bf16.mxu0 0
    %143 = vmatpush1.bf16.msra.mxu0 %v127
    %144 = vmatprep.subr.bf16.mxu0 0
    %145 = vmatpush1.bf16.msra.mxu0 %v126
    %146 = vmatprep.subr.bf16.mxu0 0
    %147 = vmatpush1.bf16.msra.mxu0 %v125
    %148 = vmatprep.subr.bf16.mxu0 0
    %149 = vmatpush1.bf16.msra.mxu0 %v124
    %150 = vmatprep.subr.bf16.mxu0 0
    %151 = vmatpush1.bf16.msra.mxu0 %v123
    %152 = vmatprep.subr.bf16.mxu0 0
    %153 = vmatpush1.bf16.msra.mxu0 %v122
    %154 = vmatprep.subr.bf16.mxu0 0
    %155 = vmatpush2.bf16.msra.mxu0 0
    %156 = vmatprep.subr.bf16.mxu0 0
    %157 = vmatpush2.bf16.msra.mxu0 0
    %158 = vmatprep.subr.bf16.mxu0 0
    %159 = vmatpush2.bf16.msra.mxu0 0
    %160 = vmatprep.subr.bf16.mxu0 0
    %161 = vmatpush2.bf16.msra.mxu0 0
    %162 = vmatprep.subr.bf16.mxu0 0
    %163 = vmatpush2.bf16.msra.mxu0 0
    %164 = vmatprep.subr.bf16.mxu0 0
    %165 = vmatpush2.bf16.msra.mxu0 0
    %166 = vmatprep.subr.bf16.mxu0 0
    %167 = vmatpush2.bf16.msra.mxu0 0
    %168 = vmatprep.subr.bf16.mxu0 0
    %169 = vmatpush2.bf16.msra.mxu0 0
    %170 = vmatprep.mubr.bf16.mxu0 0
    %171 = vmatmul.mubr.bf16.gmra.mxu0 %v71
    %v172 = vpop.f32.mrf.mxu0
    %v173 = vadd.f32 0.0, %v172
    %v174 = vpop.f32.mrf.mxu0
    %v175 = vpop.f32.mrf.mxu0
    %v176 = vadd.f32 0.0, %v175
    %v177 = vpop.f32.mrf.mxu0
    %178 = vdwg.mxu0
    %v179 = vadd.f32 %v72, %v173
    %v180 = vadd.f32 %v73, %v176
    %181 = vst [vmem:[#allocation2] sm:$0xff] %v179
    %182 = vst [vmem:[#allocation2 + $0x8] sm:$0xff] %v180
    // Predicated region
    $region38: #{tpu_custom_call.1} parent=1 // pred_check
      %p183 = pneg %p63
    $region39: #{tpu_custom_call.1} parent=1 // pred_check_branch
      %185 = sbr.rel (%p183) target = $region41
    $region40: #{tpu_custom_call.1} parent=1 // pred_region
      %v186 = vld [vmem:[#allocation2] sm:$0xff]
      %v187 = vld [vmem:[#allocation2 + $0x8] sm:$0xff]
      %v188 = vld [vmem:[%s2] sm:$0x1]
      %v190 = vlaneseq
      %v191 = vshrl.u32 %v190, 7
      %v192 = vsub.s32 0, %v191
      %v193 = vrot.slane %v188, %v192
      %v195 = vadd.f32 %v186, %v193
      %v196 = vadd.f32 %v187, %v193
      %v197 = vmax.f32 %v195, 0.0
      %v198 = vmax.f32 %v196, 0.0
      %v199 = vpack.c.bf16 %v198, %v197
      %v200 = vld [vmem:[#allocation8] sm:$0xf]
      %v201 = vld [vmem:[#allocation8 + $0x4] sm:$0xf]
      %v202 = vld [vmem:[#allocation8 + $0x8] sm:$0xf]
      %v203 = vld [vmem:[#allocation8 + $0xc] sm:$0xf]
      %v204 = vld [vmem:[#allocation8 + $0x10] sm:$0xf]
      %v205 = vld [vmem:[#allocation8 + $0x14] sm:$0xf]
      %v206 = vld [vmem:[#allocation8 + $0x18] sm:$0xf]
      %v207 = vld [vmem:[#allocation8 + $0x1c] sm:$0xf]
      %v208 = vld [vmem:[#allocation8 + $0x20] sm:$0xf]
      %v209 = vld [vmem:[#allocation8 + $0x24] sm:$0xf]
      %v210 = vld [vmem:[#allocation8 + $0x28] sm:$0xf]
      %v211 = vld [vmem:[#allocation8 + $0x2c] sm:$0xf]
      %v212 = vld [vmem:[#allocation8 + $0x30] sm:$0xf]
      %v213 = vld [vmem:[#allocation8 + $0x34] sm:$0xf]
      %v214 = vld [vmem:[#allocation8 + $0x38] sm:$0xf]
      %v215 = vld [vmem:[#allocation8 + $0x3c] sm:$0xf]
      %v216 = vld [vmem:[%s4] sm:$0x1]
      %v218 = vlaneseq
      %v219 = vshrl.u32 %v218, 7
      %v220 = vsub.s32 0, %v219
      %v221 = vrot.slane %v216, %v220
      %v239 = vunpack.c.l.b16 %v200
      %v240 = vunpack.c.l.b16 %v201
      %v241 = vunpack.c.l.b16 %v202
      %v242 = vunpack.c.l.b16 %v203
      %v243 = vunpack.c.l.b16 %v204
      %v244 = vunpack.c.l.b16 %v205
      %v245 = vunpack.c.l.b16 %v206
      %v246 = vunpack.c.l.b16 %v207
      %v247 = vunpack.c.l.b16 %v208
      %v248 = vunpack.c.l.b16 %v209
      %v249 = vunpack.c.l.b16 %v210
      %v250 = vunpack.c.l.b16 %v211
      %v251 = vunpack.c.l.b16 %v212
      %v252 = vunpack.c.l.b16 %v213
      %v253 = vunpack.c.l.b16 %v214
      %v254 = vunpack.c.l.b16 %v215
      %v255 = vpack.c.b16 %v240, %v239
      %v256 = vpack.c.b16 %v242, %v241
      %v257 = vpack.c.b16 %v244, %v243
      %v258 = vpack.c.b16 %v246, %v245
      %v259 = vpack.c.b16 %v248, %v247
      %v260 = vpack.c.b16 %v250, %v249
      %v261 = vpack.c.b16 %v252, %v251
      %v262 = vpack.c.b16 %v254, %v253
      %271 = vmatprep.subr.bf16.mxu0 0
      %272 = vmatpush1.bf16.msra.mxu0 %v262
      %273 = vmatprep.subr.bf16.mxu0 0
      %274 = vmatpush1.bf16.msra.mxu0 %v261
      %275 = vmatprep.subr.bf16.mxu0 0
      %276 = vmatpush1.bf16.msra.mxu0 %v260
      %277 = vmatprep.subr.bf16.mxu0 0
      %278 = vmatpush1.bf16.msra.mxu0 %v259
      %279 = vmatprep.subr.bf16.mxu0 0
      %280 = vmatpush1.bf16.msra.mxu0 %v258
      %281 = vmatprep.subr.bf16.mxu0 0
      %282 = vmatpush1.bf16.msra.mxu0 %v257
      %283 = vmatprep.subr.bf16.mxu0 0
      %284 = vmatpush1.bf16.msra.mxu0 %v256
      %285 = vmatprep.subr.bf16.mxu0 0
      %286 = vmatpush1.bf16.msra.mxu0 %v255
      %287 = vmatprep.subr.bf16.mxu0 0
      %288 = vmatpush2.bf16.msra.mxu0 0
      %289 = vmatprep.subr.bf16.mxu0 0
      %290 = vmatpush2.bf16.msra.mxu0 0
      %291 = vmatprep.subr.bf16.mxu0 0
      %292 = vmatpush2.bf16.msra.mxu0 0
      %293 = vmatprep.subr.bf16.mxu0 0
      %294 = vmatpush2.bf16.msra.mxu0 0
      %295 = vmatprep.subr.bf16.mxu0 0
      %296 = vmatpush2.bf16.msra.mxu0 0
      %297 = vmatprep.subr.bf16.mxu0 0
      %298 = vmatpush2.bf16.msra.mxu0 0
      %299 = vmatprep.subr.bf16.mxu0 0
      %300 = vmatpush2.bf16.msra.mxu0 0
      %301 = vmatprep.subr.bf16.mxu0 0
      %302 = vmatpush2.bf16.msra.mxu0 0
      %303 = vmatprep.mubr.bf16.mxu0 0
      %304 = vmatmul.mubr.bf16.gmra.mxu0 %v199
      %v305 = vpop.f32.mrf.mxu0
      %v306 = vadd.f32 %v221, %v305
      %v307 = vpop.f32.mrf.mxu0
      %v308 = vpop.f32.mrf.mxu0
      %v309 = vadd.f32 %v221, %v308
      %v310 = vpop.f32.mrf.mxu0
      %311 = vdwg.mxu0
      %v312 = vmax.f32 %v306, 0.0
      %v313 = vmax.f32 %v309, 0.0
      %v314 = vpack.c.bf16 %v313, %v312
      %v316 = vcombine.high %v314, %v314
      %v318 = vunpack.c.l.s4 1966171168
      %v319 = vunpack.c.0.s8 %v318
      %v320 = vlaneseq
      %v321 = vshrl.u32 %v320, 7
      %v322 = vsub.s32 %v319, %v321
      %v323 = vrot.slane %v314, %v322
      %v325 = vunpack.c.l.s4 1966171168
      %v326 = vunpack.c.0.s8 %v325
      %v327 = vlaneseq
      %v328 = vshrl.u32 %v327, 7
      %v329 = vsub.s32 %v326, %v328
      %v330 = vrot.slane %v316, %v329
      %v331 = vcombine.high %v323, %v323
      %v332 = vcombine.high %v330, %v330
      %v334 = vunpack.c.l.s4 1966171168
      %v335 = vunpack.c.0.s8 %v334
      %v336 = vlaneseq
      %v337 = vshrl.u32 %v336, 7
      %v338 = vsub.s32 %v335, %v337
      %v339 = vrot.slane %v323, %v338
      %v341 = vunpack.c.l.s4 1966171168
      %v342 = vunpack.c.0.s8 %v341
      %v343 = vlaneseq
      %v344 = vshrl.u32 %v343, 7
      %v345 = vsub.s32 %v342, %v344
      %v346 = vrot.slane %v330, %v345
      %v348 = vunpack.c.l.s4 1966171168
      %v349 = vunpack.c.0.s8 %v348
      %v350 = vlaneseq
      %v351 = vshrl.u32 %v350, 7
      %v352 = vsub.s32 %v349, %v351
      %v353 = vrot.slane %v331, %v352
      %v355 = vunpack.c.l.s4 1966171168
      %v356 = vunpack.c.0.s8 %v355
      %v357 = vlaneseq
      %v358 = vshrl.u32 %v357, 7
      %v359 = vsub.s32 %v356, %v358
      %v360 = vrot.slane %v332, %v359
      %v361 = vcombine.high %v339, %v339
      %v362 = vcombine.high %v346, %v346
      %v363 = vcombine.high %v353, %v353
      %v364 = vcombine.high %v360, %v360
      %373 = vst [vmem:[#allocation9] sm:$0x1] %v339
      %374 = vst [vmem:[#allocation9 + $0x1] sm:$0x1] %v353
      %375 = vst [vmem:[#allocation9 + $0x2] sm:$0x1] %v361
      %376 = vst [vmem:[#allocation9 + $0x3] sm:$0x1] %v363
      %377 = vst [vmem:[#allocation9 + $0x4] sm:$0x1] %v346
      %378 = vst [vmem:[#allocation9 + $0x5] sm:$0x1] %v360
      %379 = vst [vmem:[#allocation9 + $0x6] sm:$0x1] %v362
      %380 = vst [vmem:[#allocation9 + $0x7] sm:$0x1] %v364
    $region41: #{tpu_custom_call.1} parent=1 // pred_fallthru
      _
    // Predicated region
    $region42: #{tpu_custom_call.1} parent=1 // pred_check
      _
    $region43: #{tpu_custom_call.1} parent=1 // pred_check_branch
      %382 = sbr.rel (0) target = $region45
    $region44: #{tpu_custom_call.1} parent=1 // pred_region
      %s384 = ssub.s32 128, 16
      %385 = vsyncadd [#allocation5], %s384
      %s386 = sshll.u32 [#allocation9], 4
      %s387 = int_to_ptr.vmem [resolvable:$true] %s386
      %392 = dma.vmem_to_hbm [thread:$0]  %s387, 16, %s5, [#allocation5], 16, 16, 1
    $region45: #{tpu_custom_call.1} parent=1 // pred_fallthru
      _
    // Predicated region
    $region46: #{tpu_custom_call.1} parent=1 // pred_check
      _
    $region47: #{tpu_custom_call.1} parent=1 // pred_check_branch
      %394 = sbr.rel (0) target = $region49
    $region48: #{tpu_custom_call.1} parent=1 // pred_region
      %395 = dma.done [#allocation5], 128
    $region49: #{tpu_custom_call.1} parent=1 // pred_fallthru
      _
    %396 = vsyncpa [#allocation4], 1
    %397 = vsyncpa [#allocation7], 1
    %398 = vsyncpa [#allocation5], 1

</llo_original>
